<compile_context>
chip_gen: v7x
topology: tpu7x:2x2x1
jax: 0.10.0
libtpu: 0.0.40
codegen_flags: <defaults>
</compile_context>

<pallas_src>
import functools

import jax
import jax.numpy as jnp
from jax.experimental import pallas as pl
from jax.experimental.pallas import tpu as pltpu


def _round_up(x, m):
    return (x + m - 1) // m * m


def eges_kernel(embs_ref, w_ref, ctx_ref, out_ref, *, row_block):
    """One batch tile of the fused EGES head.

    embs_ref : (S, TB, D)  stacked [item_in, side_0, side_1, ...] embeddings
    w_ref    : (TB, S)     raw attention weights (pre-softmax)
    ctx_ref  : (C, TB, D)  output-table embeddings of the C context items
    out_ref  : (TB, C)     sigmoid(<hidden_b, ctx_{c,b}>)
    """
    S, TB, D = embs_ref.shape
    C = ctx_ref.shape[0]

    # Unrolled loop over row chunks keeps vreg pressure bounded even when TB is
    # sized for VMEM (hundreds of rows); each chunk's results are stored immediately.
    for r0 in range(0, TB, row_block):
        rb = min(row_block, TB - r0)
        rows = pl.ds(r0, rb)

        # --- softmax over the S (item + side-info) axis -------------------------
        # Column-unrolled: stays on the VPU/EUP (no cross-lane reduce for a tiny
        # S-wide axis), and the (rb, 1) columns broadcast naturally over D lanes.
        w_all = w_ref[rows, :].astype(jnp.float32)                   # (rb, S)
        w_cols = [w_all[:, s:s + 1] for s in range(S)]               # S x (rb, 1)
        m = w_cols[0]
        for s in range(1, S):
            m = jnp.maximum(m, w_cols[s])
        e_cols = [jnp.exp(wc - m) for wc in w_cols]
        denom = e_cols[0]
        for s in range(1, S):
            denom = denom + e_cols[s]
        inv = pl.reciprocal(denom, approx=True)                      # EUP slot, ~free

        # --- hidden_b = sum_s softmax(w)[b, s] * embs[s, b, :]  (f32 accumulate) --
        # S is tiny, so an unrolled multiply-add on the VPU beats any contraction.
        hidden = (e_cols[0] * inv) * embs_ref[0, rows, :].astype(jnp.float32)
        for s in range(1, S):
            hidden = hidden + (e_cols[s] * inv) * embs_ref[s, rows, :].astype(jnp.float32)

        # --- logits[b, c] = <hidden_b, ctx[c, b, :]> ------------------------------
        # Loop over the small C axis so we never materialize a (rb, C, D) temporary.
        cols = []
        for c in range(C):
            ctx_c = ctx_ref[c, rows, :].astype(jnp.float32)          # (rb, D)
            cols.append(jnp.sum(hidden * ctx_c, axis=-1, keepdims=True))
        logits = jnp.concatenate(cols, axis=-1)                      # (rb, C)

        # Output store is tiny relative to the D-wide input traffic; (rb, C) is kept
        # in the natural layout rather than padding/transposing for lane density.
        out_ref[rows, :] = jax.nn.sigmoid(logits).astype(out_ref.dtype)


def eges_forward(params, central_items, central_side_informations, context_items,
                 *, batch_block=512):
    emb_in = params["item_embedding_in"]      # (num_items, D)
    emb_out = params["item_embedding_out"]    # (num_items, D)
    weights_tbl = params["weights"]           # (num_items, S)
    side_tables = params["side_info_embeddings"]

    D = emb_in.shape[1]
    B = central_items.shape[0]
    C = context_items.shape[1]

    # --- glue: embedding gathers / multi-valued side-info mean (pure integer indexing)
    # TODO(synk): fuse the gathers into the kernel (scalar-prefetch item/context ids to
    # SMEM + double-buffered make_async_copy row gathers from memory_space=pl.ANY
    # tables) to drop the extra HBM round-trip the XLA gather costs today.
    item_embs = emb_in[central_items]                                 # (B, D)
    side_embs = []
    for i, si in enumerate(central_side_informations):
        e = side_tables[i][si]                                        # (B, D) or (B, L, D)
        if e.ndim == 3:
            e = e.mean(axis=1)                                        # mean over multi-valued side info
        side_embs.append(e)
    embs = jnp.stack([item_embs] + side_embs, axis=0)                 # (S, B, D)
    w = weights_tbl[central_items]                                    # (B, S)
    ctx = emb_out[context_items.T]                                    # (C, B, D) (transposed gather)
    S = embs.shape[0]

    # --- lane-pad D so every (rows, D) slice the kernel touches is dense/aligned ---
    # Zero padding is exact: padded lanes contribute 0 to both the weighted sum and
    # the hidden . context dot product.
    d_pad = _round_up(D, 128)
    if d_pad != D:
        embs = jnp.pad(embs, ((0, 0), (0, 0), (0, d_pad - D)))
        ctx = jnp.pad(ctx, ((0, 0), (0, 0), (0, d_pad - D)))

    # --- batch tiling (pad B to a multiple of the tile) ---
    if B >= batch_block:
        tb = batch_block
    else:
        tb = _round_up(B, 8)
    b_pad = _round_up(B, tb)
    if b_pad != B:
        pad = b_pad - B
        embs = jnp.pad(embs, ((0, 0), (0, pad), (0, 0)))
        w = jnp.pad(w, ((0, pad), (0, 0)))
        ctx = jnp.pad(ctx, ((0, 0), (0, pad), (0, 0)))
    num_tiles = b_pad // tb
    row_block = min(tb, 128)

    # Double-buffered tiles + headroom; safe on v5e/v6e/v7x scoped-VMEM defaults.
    tile_bytes = 4 * tb * (S * d_pad + S + C * d_pad + C)
    vmem_limit = min(max(4 * tile_bytes, 16 * 1024 * 1024), 64 * 1024 * 1024)

    out = pl.pallas_call(
        functools.partial(eges_kernel, row_block=row_block),
        out_shape=jax.ShapeDtypeStruct((b_pad, C), jnp.float32),
        grid=(num_tiles,),
        in_specs=[
            pl.BlockSpec((S, tb, d_pad), lambda i: (0, i, 0)),
            pl.BlockSpec((tb, S), lambda i: (i, 0)),
            pl.BlockSpec((C, tb, d_pad), lambda i: (0, i, 0)),
        ],
        out_specs=pl.BlockSpec((tb, C), lambda i: (i, 0)),
        compiler_params=pltpu.CompilerParams(
            dimension_semantics=("parallel",),
            vmem_limit_bytes=vmem_limit,
        ),
    )(embs, w, ctx)
    return out[:B]


def init_params(key, num_items, side_info_vocab_sizes, emb_dims):
    init_range = 0.5 / emb_dims
    k = jax.random.split(key, 3 + len(side_info_vocab_sizes))
    params = {
        "item_embedding_in": jax.random.uniform(
            k[0], (num_items, emb_dims), jnp.float32, -init_range, init_range),
        "item_embedding_out": jax.random.uniform(
            k[1], (num_items, emb_dims), jnp.float32, -init_range, init_range),
        # nn.Embedding default init (N(0,1)); not overridden in _init_embedding
        "weights": jax.random.normal(
            k[2], (num_items, len(side_info_vocab_sizes) + 1), jnp.float32),
        "side_info_embeddings": [
            jax.random.uniform(
                k[3 + i], (v, emb_dims), jnp.float32, -init_range, init_range)
            for i, v in enumerate(side_info_vocab_sizes)
        ],
    }
    return params


def reference_forward(params, central_items, central_side_informations, context_items):
    # pure-JAX reference mirroring the PyTorch forward exactly
    emb_in = params["item_embedding_in"]
    emb_out = params["item_embedding_out"]
    item_embs = emb_in[central_items]
    side_embs = []
    for i, si in enumerate(central_side_informations):
        e = params["side_info_embeddings"][i][si]
        if e.ndim == 3:
            e = e.mean(axis=1)
        side_embs.append(e)
    B = central_items.shape[0]
    D = emb_in.shape[1]
    embs = jnp.concatenate([item_embs] + side_embs, axis=-1).reshape(B, -1, D)
    w = jax.nn.softmax(params["weights"][central_items], axis=1)
    hidden = jnp.einsum("bs,bsd->bd", w, embs)
    ctx = emb_out[context_items]
    logits = jnp.einsum("bd,bcd->bc", hidden, ctx)
    return jax.nn.sigmoid(logits)


if __name__ == "__main__":
    num_items = 64
    side_info_vocab_sizes = [12, 7]
    emb_dims = 100      # PyTorch default; the kernel lane-pads D to 128 internally
    B = 40              # batch (exercises multi-tile grid + padding with batch_block=16)
    C = 8               # context items per example
    L = 3               # multi-valued second side info

    key = jax.random.PRNGKey(0)
    kp, k1, k2, k3, k4 = jax.random.split(key, 5)

    params = init_params(kp, num_items, side_info_vocab_sizes, emb_dims)

    central_items = jax.random.randint(k1, (B,), 0, num_items)
    side_info_0 = jax.random.randint(k2, (B,), 0, side_info_vocab_sizes[0])        # (B,)
    side_info_1 = jax.random.randint(k3, (B, L), 0, side_info_vocab_sizes[1])      # (B, L) -> mean path
    central_side_informations = [side_info_0, side_info_1]
    context_items = jax.random.randint(k4, (B, C), 0, num_items)

    out = eges_forward(params, central_items, central_side_informations, context_items,
                       batch_block=16)   # small tile so the demo runs a 3-step batch grid
    out = jax.block_until_ready(out)

    ref = reference_forward(params, central_items, central_side_informations, context_items)
    assert out.shape == (B, C)
    max_err = float(jnp.max(jnp.abs(out - ref)))
    assert jnp.allclose(out, ref, atol=1e-5, rtol=1e-5), max_err

    print("KERNEL_OK")
</pallas_src>

<mosaic_0001>
module attributes {stable_mosaic.version = 11 : i64} {
  func.func @eges_kernel(%arg0: i32, %arg1: memref<3x16x128xf32, #tpu.memory_space<vmem>>, %arg2: memref<16x3xf32, #tpu.memory_space<vmem>>, %arg3: memref<8x16x128xf32, #tpu.memory_space<vmem>>, %arg4: memref<16x8xf32, #tpu.memory_space<vmem>>) attributes {dimension_semantics = [#tpu.dimension_semantics<parallel>], iteration_bounds = array<i64: 3>, scalar_prefetch = 0 : i64, scratch_operands = 0 : i64, tpu.core_type = #tpu.core_type<tc>, window_params = [{transform_indices = @transform_0, window_bounds = array<i64: 3, 16, 128>}, {transform_indices = @transform_1, window_bounds = array<i64: 16, 3>}, {transform_indices = @transform_2, window_bounds = array<i64: 8, 16, 128>}, {transform_indices = @transform_3, window_bounds = array<i64: 16, 8>}]} {
    %c0 = arith.constant 0 : index
    %c0_0 = arith.constant 0 : index
    %0 = vector.load %arg2[%c0, %c0_0] : memref<16x3xf32, #tpu.memory_space<vmem>>, vector<16x3xf32>
    %1 = vector.extract_strided_slice %0 {offsets = [0, 0], sizes = [16, 1], strides = [1, 1]} : vector<16x3xf32> to vector<16x1xf32>
    %2 = vector.extract_strided_slice %0 {offsets = [0, 1], sizes = [16, 1], strides = [1, 1]} : vector<16x3xf32> to vector<16x1xf32>
    %3 = vector.extract_strided_slice %0 {offsets = [0, 2], sizes = [16, 1], strides = [1, 1]} : vector<16x3xf32> to vector<16x1xf32>
    %4 = arith.maximumf %1, %2 : vector<16x1xf32>
    %5 = arith.maximumf %4, %3 : vector<16x1xf32>
    %6 = arith.subf %1, %5 : vector<16x1xf32>
    %7 = math.exp %6 : vector<16x1xf32>
    %8 = arith.subf %2, %5 : vector<16x1xf32>
    %9 = math.exp %8 : vector<16x1xf32>
    %10 = arith.subf %3, %5 : vector<16x1xf32>
    %11 = math.exp %10 : vector<16x1xf32>
    %12 = arith.addf %7, %9 : vector<16x1xf32>
    %13 = arith.addf %12, %11 : vector<16x1xf32>
    %14 = tpu.reciprocal %13 {approx = true} : vector<16x1xf32> -> vector<16x1xf32>
    %15 = arith.mulf %7, %14 : vector<16x1xf32>
    %c0_1 = arith.constant 0 : index
    %c0_2 = arith.constant 0 : index
    %c0_3 = arith.constant 0 : index
    %16 = vector.load %arg1[%c0_1, %c0_2, %c0_3] : memref<3x16x128xf32, #tpu.memory_space<vmem>>, vector<1x16x128xf32>
    %17 = vector.shape_cast %16 : vector<1x16x128xf32> to vector<16x128xf32>
    %18 = vector.broadcast %15 : vector<16x1xf32> to vector<16x128xf32>
    %19 = arith.mulf %18, %17 : vector<16x128xf32>
    %20 = arith.mulf %9, %14 : vector<16x1xf32>
    %c1 = arith.constant 1 : index
    %c0_4 = arith.constant 0 : index
    %c0_5 = arith.constant 0 : index
    %21 = vector.load %arg1[%c1, %c0_4, %c0_5] : memref<3x16x128xf32, #tpu.memory_space<vmem>>, vector<1x16x128xf32>
    %22 = vector.shape_cast %21 : vector<1x16x128xf32> to vector<16x128xf32>
    %23 = vector.broadcast %20 : vector<16x1xf32> to vector<16x128xf32>
    %24 = arith.mulf %23, %22 : vector<16x128xf32>
    %25 = arith.addf %19, %24 : vector<16x128xf32>
    %26 = arith.mulf %11, %14 : vector<16x1xf32>
    %c2 = arith.constant 2 : index
    %c0_6 = arith.constant 0 : index
    %c0_7 = arith.constant 0 : index
    %27 = vector.load %arg1[%c2, %c0_6, %c0_7] : memref<3x16x128xf32, #tpu.memory_space<vmem>>, vector<1x16x128xf32>
    %28 = vector.shape_cast %27 : vector<1x16x128xf32> to vector<16x128xf32>
    %29 = vector.broadcast %26 : vector<16x1xf32> to vector<16x128xf32>
    %30 = arith.mulf %29, %28 : vector<16x128xf32>
    %31 = arith.addf %25, %30 : vector<16x128xf32>
    %c0_8 = arith.constant 0 : index
    %c0_9 = arith.constant 0 : index
    %c0_10 = arith.constant 0 : index
    %32 = vector.load %arg3[%c0_8, %c0_9, %c0_10] : memref<8x16x128xf32, #tpu.memory_space<vmem>>, vector<1x16x128xf32>
    %33 = vector.shape_cast %32 : vector<1x16x128xf32> to vector<16x128xf32>
    %34 = arith.mulf %31, %33 : vector<16x128xf32>
    %cst = arith.constant dense<0.000000e+00> : vector<16xf32>
    %35 = vector.multi_reduction <add>, %34, %cst [1] : vector<16x128xf32> to vector<16xf32>
    %36 = vector.shape_cast %35 : vector<16xf32> to vector<16x1xf32>
    %c1_11 = arith.constant 1 : index
    %c0_12 = arith.constant 0 : index
    %c0_13 = arith.constant 0 : index
    %37 = vector.load %arg3[%c1_11, %c0_12, %c0_13] : memref<8x16x128xf32, #tpu.memory_space<vmem>>, vector<1x16x128xf32>
    %38 = vector.shape_cast %37 : vector<1x16x128xf32> to vector<16x128xf32>
    %39 = arith.mulf %31, %38 : vector<16x128xf32>
    %cst_14 = arith.constant dense<0.000000e+00> : vector<16xf32>
    %40 = vector.multi_reduction <add>, %39, %cst_14 [1] : vector<16x128xf32> to vector<16xf32>
    %41 = vector.shape_cast %40 : vector<16xf32> to vector<16x1xf32>
    %c2_15 = arith.constant 2 : index
    %c0_16 = arith.constant 0 : index
    %c0_17 = arith.constant 0 : index
    %42 = vector.load %arg3[%c2_15, %c0_16, %c0_17] : memref<8x16x128xf32, #tpu.memory_space<vmem>>, vector<1x16x128xf32>
    %43 = vector.shape_cast %42 : vector<1x16x128xf32> to vector<16x128xf32>
    %44 = arith.mulf %31, %43 : vector<16x128xf32>
    %cst_18 = arith.constant dense<0.000000e+00> : vector<16xf32>
    %45 = vector.multi_reduction <add>, %44, %cst_18 [1] : vector<16x128xf32> to vector<16xf32>
    %46 = vector.shape_cast %45 : vector<16xf32> to vector<16x1xf32>
    %c3 = arith.constant 3 : index
    %c0_19 = arith.constant 0 : index
    %c0_20 = arith.constant 0 : index
    %47 = vector.load %arg3[%c3, %c0_19, %c0_20] : memref<8x16x128xf32, #tpu.memory_space<vmem>>, vector<1x16x128xf32>
    %48 = vector.shape_cast %47 : vector<1x16x128xf32> to vector<16x128xf32>
    %49 = arith.mulf %31, %48 : vector<16x128xf32>
    %cst_21 = arith.constant dense<0.000000e+00> : vector<16xf32>
    %50 = vector.multi_reduction <add>, %49, %cst_21 [1] : vector<16x128xf32> to vector<16xf32>
    %51 = vector.shape_cast %50 : vector<16xf32> to vector<16x1xf32>
    %c4 = arith.constant 4 : index
    %c0_22 = arith.constant 0 : index
    %c0_23 = arith.constant 0 : index
    %52 = vector.load %arg3[%c4, %c0_22, %c0_23] : memref<8x16x128xf32, #tpu.memory_space<vmem>>, vector<1x16x128xf32>
    %53 = vector.shape_cast %52 : vector<1x16x128xf32> to vector<16x128xf32>
    %54 = arith.mulf %31, %53 : vector<16x128xf32>
    %cst_24 = arith.constant dense<0.000000e+00> : vector<16xf32>
    %55 = vector.multi_reduction <add>, %54, %cst_24 [1] : vector<16x128xf32> to vector<16xf32>
    %56 = vector.shape_cast %55 : vector<16xf32> to vector<16x1xf32>
    %c5 = arith.constant 5 : index
    %c0_25 = arith.constant 0 : index
    %c0_26 = arith.constant 0 : index
    %57 = vector.load %arg3[%c5, %c0_25, %c0_26] : memref<8x16x128xf32, #tpu.memory_space<vmem>>, vector<1x16x128xf32>
    %58 = vector.shape_cast %57 : vector<1x16x128xf32> to vector<16x128xf32>
    %59 = arith.mulf %31, %58 : vector<16x128xf32>
    %cst_27 = arith.constant dense<0.000000e+00> : vector<16xf32>
    %60 = vector.multi_reduction <add>, %59, %cst_27 [1] : vector<16x128xf32> to vector<16xf32>
    %61 = vector.shape_cast %60 : vector<16xf32> to vector<16x1xf32>
    %c6 = arith.constant 6 : index
    %c0_28 = arith.constant 0 : index
    %c0_29 = arith.constant 0 : index
    %62 = vector.load %arg3[%c6, %c0_28, %c0_29] : memref<8x16x128xf32, #tpu.memory_space<vmem>>, vector<1x16x128xf32>
    %63 = vector.shape_cast %62 : vector<1x16x128xf32> to vector<16x128xf32>
    %64 = arith.mulf %31, %63 : vector<16x128xf32>
    %cst_30 = arith.constant dense<0.000000e+00> : vector<16xf32>
    %65 = vector.multi_reduction <add>, %64, %cst_30 [1] : vector<16x128xf32> to vector<16xf32>
    %66 = vector.shape_cast %65 : vector<16xf32> to vector<16x1xf32>
    %c7 = arith.constant 7 : index
    %c0_31 = arith.constant 0 : index
    %c0_32 = arith.constant 0 : index
    %67 = vector.load %arg3[%c7, %c0_31, %c0_32] : memref<8x16x128xf32, #tpu.memory_space<vmem>>, vector<1x16x128xf32>
    %68 = vector.shape_cast %67 : vector<1x16x128xf32> to vector<16x128xf32>
    %69 = arith.mulf %31, %68 : vector<16x128xf32>
    %cst_33 = arith.constant dense<0.000000e+00> : vector<16xf32>
    %70 = vector.multi_reduction <add>, %69, %cst_33 [1] : vector<16x128xf32> to vector<16xf32>
    %71 = vector.shape_cast %70 : vector<16xf32> to vector<16x1xf32>
    %72 = tpu.concatenate %36, %41, %46, %51, %56, %61, %66, %71 in 1 : vector<16x1xf32>, vector<16x1xf32>, vector<16x1xf32>, vector<16x1xf32>, vector<16x1xf32>, vector<16x1xf32>, vector<16x1xf32>, vector<16x1xf32> -> vector<16x8xf32>
    %73 = arith.negf %72 : vector<16x8xf32>
    %74 = math.exp %73 : vector<16x8xf32>
    %cst_34 = arith.constant 1.000000e+00 : f32
    %75 = vector.broadcast %cst_34 : f32 to vector<16x8xf32>
    %76 = arith.addf %75, %74 : vector<16x8xf32>
    %77 = arith.divf %75, %76 : vector<16x8xf32>
    %c0_35 = arith.constant 0 : index
    %c0_36 = arith.constant 0 : index
    %78 = vector.load %arg4[%c0_35, %c0_36] : memref<16x8xf32, #tpu.memory_space<vmem>>, vector<16x8xf32>
    tpu.vector_store %arg4[%c0_35, %c0_36], %77 {strides = array<i32>} : memref<16x8xf32, #tpu.memory_space<vmem>>, vector<16x8xf32>,
    return
  }
  func.func @transform_0(%arg0: i32) -> (i32, i32, i32) {
    %c0_i32 = arith.constant 0 : i32
    %c0_i32_0 = arith.constant 0 : i32
    %c0_i32_1 = arith.constant 0 : i32
    return %c0_i32, %arg0, %c0_i32_0 : i32, i32, i32
  }
  func.func @transform_1(%arg0: i32) -> (i32, i32) {
    %c0_i32 = arith.constant 0 : i32
    %c0_i32_0 = arith.constant 0 : i32
    return %arg0, %c0_i32 : i32, i32
  }
  func.func @transform_2(%arg0: i32) -> (i32, i32, i32) {
    %c0_i32 = arith.constant 0 : i32
    %c0_i32_0 = arith.constant 0 : i32
    %c0_i32_1 = arith.constant 0 : i32
    return %c0_i32, %arg0, %c0_i32_0 : i32, i32, i32
  }
  func.func @transform_3(%arg0: i32) -> (i32, i32) {
    %c0_i32 = arith.constant 0 : i32
    %c0_i32_0 = arith.constant 0 : i32
    return %arg0, %c0_i32 : i32, i32
  }
}

</mosaic_0001>

<llo_original>
// kernel: tpu_custom_call.1
$region0: #{tpu_custom_call.1}
  #allocation0 [shape = 'u32[]', space=smem, size = 0x4, offset = 0x4, fixed_abs, tag = 'smem constant byte address 0x4 - core index']
  #allocation1 [shape = 'u32[144,128]{1,0:T(1,128)}', space=vmem, size = 0x12000, scoped, tag = 'internal scratch']
  #allocation6 [shape = 's32[]', space=sflag, size = 0x4, offset = 0, fixed_abs, tag = 'sflag constant byte address 0x0 - dummy sync flag']
  #allocation8 [shape = 's32[]', space=sflag, size = 0x4, offset = 0, fixed_abs, tag = 'sflag constant byte address 0x0 - dummy sync flag']
  %s0 = inlined_call_operand.hbm [shape: f32[3,48,128], index: 0, kind: input, shape index: {}]
  %s1 = inlined_call_operand.vmem [shape: f32[48,3], index: 1, kind: input, shape index: {}]
  %s2 = inlined_call_operand.hbm [shape: f32[8,48,128], index: 2, kind: input, shape index: {}]
  %s3 = inlined_call_operand.vmem [shape: f32[48,8], index: 3, kind: output, shape index: {}]
  %s4 = sld [smem:[#allocation0]]
  $region53: #{tpu_custom_call.1} parent=0
    _
  %s6 = ssub.s32 1, %s4
  %s7 = scalar_select 0, %s6, %s4
  $region1: #{tpu_custom_call.1} parent=0
    #allocation2 [shape = 'u8[49152]{0}', space=vmem, size = 0xc000, scoped, tag = 'input window, operand 0']
    #allocation3 [shape = 's32[2]{0}', space=sflag, size = 0x8, scoped, tag = 'scoped memory for tpu_custom_call.1']
    #allocation4 [shape = 'u8[131072]{0}', space=vmem, size = 0x20000, scoped, tag = 'input window, operand 2']
    #allocation5 [shape = 's32[2]{0}', space=sflag, size = 0x8, scoped, tag = 'scoped memory for tpu_custom_call.1']
    %8 = vsyncpa [#allocation3], 0
    %s9 = scalar_lea.sflag [#allocation3], 1
    %10 = vsyncpa %s9, 0
    %11 = vsyncpa [#allocation5], 0
    %s12 = scalar_lea.sflag [#allocation5], 1
    %13 = vsyncpa %s12, 0
    loop: start=0, step=1, limit=5
    $region2: #{tpu_custom_call.1} parent=1 // loop_pre_header
      _
    $region3: #{tpu_custom_call.1} parent=1 // loop_header
      %s15 = sphi 0, %s19
      %p16 = scmp.ge.s32.totalorder %s15, 5
      %s25 = sphi 0, %s27
      %s28 = sphi 0, %s25
      %s29 = sphi 0, %s28
      %s45 = sphi 0, %s29
      %s51 = sphi 0, %s53
      %s54 = sphi 0, %s51
      %s55 = sphi 0, %s54
      %s71 = sphi 0, %s55
      %s77 = sphi 0, %s79
      %s80 = sphi 0, %s77
      %s81 = sphi 0, %s80
      %s97 = sphi 0, %s81
      %s103 = sphi 0, %s105
      %s106 = sphi 0, %s103
      %s107 = sphi 0, %s106
      %s123 = sphi 0, %s107
    $region4: #{tpu_custom_call.1} parent=1 // loop_header_branch
      %18 = sbr.rel (%p16) target = $region8
    $region5: #{tpu_custom_call.1} parent=1 // loop_body
      %s20 = ssub.s32 %s15, 1
      %s21 = ssub.s32 %s15, 2
      %s22 = sadd.s32 %s15, 1
      %s23 = ssub.s32 %s15, %s22
      %p24 = scmp.eq.s32.totalorder %s23, 0
      %s26 = sadd.s32 %s25, 1
      %s27 = scalar_select %p24, %s25, %s26
      %p30 = pneg %p24
      %p31 = scmp.eq.s32.totalorder %s15, 2
      %p32 = por %p30, %p31
      %p33 = scmp.ne.s32.totalorder %s25, %s28
      %p34 = scmp.eq.s32.totalorder %s15, 0
      %p35 = por %p33, %p34
      %p36 = scmp.ne.s32.totalorder %s25, %s28
      %p37 = scmp.eq.s32.totalorder %s20, 2
      %p38 = por %p36, %p37
      %p39 = scmp.ne.s32.totalorder %s28, %s29
      %p40 = scmp.eq.s32.totalorder %s20, 0
      %p41 = por %p39, %p40
      %p42 = scmp.ne.s32.totalorder %s28, %s29
      %p43 = scmp.eq.s32.totalorder %s21, 2
      %p44 = por %p42, %p43
      %p46 = scmp.ne.s32.totalorder %s29, %s45
      %p47 = scmp.eq.s32.totalorder %s21, 0
      %p48 = por %p46, %p47
      %s49 = ssub.s32 %s15, %s22
      %p50 = scmp.eq.s32.totalorder %s49, 0
      %s52 = sadd.s32 %s51, 1
      %s53 = scalar_select %p50, %s51, %s52
      %p56 = pneg %p50
      %p57 = scmp.eq.s32.totalorder %s15, 2
      %p58 = por %p56, %p57
      %p59 = scmp.ne.s32.totalorder %s51, %s54
      %p60 = scmp.eq.s32.totalorder %s15, 0
      %p61 = por %p59, %p60
      %p62 = scmp.ne.s32.totalorder %s51, %s54
      %p63 = scmp.eq.s32.totalorder %s20, 2
      %p64 = por %p62, %p63
      %p65 = scmp.ne.s32.totalorder %s54, %s55
      %p66 = scmp.eq.s32.totalorder %s20, 0
      %p67 = por %p65, %p66
      %p68 = scmp.ne.s32.totalorder %s54, %s55
      %p69 = scmp.eq.s32.totalorder %s21, 2
      %p70 = por %p68, %p69
      %p72 = scmp.ne.s32.totalorder %s55, %s71
      %p73 = scmp.eq.s32.totalorder %s21, 0
      %p74 = por %p72, %p73
      %s75 = ssub.s32 %s15, %s22
      %p76 = scmp.eq.s32.totalorder %s75, 0
      %s78 = sadd.s32 %s77, 1
      %s79 = scalar_select %p76, %s77, %s78
      %p82 = pneg %p76
      %p83 = scmp.eq.s32.totalorder %s15, 2
      %p84 = por %p82, %p83
      %p85 = scmp.ne.s32.totalorder %s77, %s80
      %p86 = scmp.eq.s32.totalorder %s15, 0
      %p87 = por %p85, %p86
      %p88 = scmp.ne.s32.totalorder %s77, %s80
      %p89 = scmp.eq.s32.totalorder %s20, 2
      %p90 = por %p88, %p89
      %p91 = scmp.ne.s32.totalorder %s80, %s81
      %p92 = scmp.eq.s32.totalorder %s20, 0
      %p93 = por %p91, %p92
      %p94 = scmp.ne.s32.totalorder %s80, %s81
      %p95 = scmp.eq.s32.totalorder %s21, 2
      %p96 = por %p94, %p95
      %p98 = scmp.ne.s32.totalorder %s81, %s97
      %p99 = scmp.eq.s32.totalorder %s21, 0
      %p100 = por %p98, %p99
      %s101 = ssub.s32 %s15, %s22
      %p102 = scmp.eq.s32.totalorder %s101, 0
      %s104 = sadd.s32 %s103, 1
      %s105 = scalar_select %p102, %s103, %s104
      %p108 = pneg %p102
      %p109 = scmp.eq.s32.totalorder %s15, 2
      %p110 = por %p108, %p109
      %p111 = scmp.ne.s32.totalorder %s103, %s106
      %p112 = scmp.eq.s32.totalorder %s15, 0
      %p113 = por %p111, %p112
      %p114 = scmp.ne.s32.totalorder %s103, %s106
      %p115 = scmp.eq.s32.totalorder %s20, 2
      %p116 = por %p114, %p115
      %p117 = scmp.ne.s32.totalorder %s106, %s107
      %p118 = scmp.eq.s32.totalorder %s20, 0
      %p119 = por %p117, %p118
      %p120 = scmp.ne.s32.totalorder %s106, %s107
      %p121 = scmp.eq.s32.totalorder %s21, 2
      %p122 = por %p120, %p121
      %p124 = scmp.ne.s32.totalorder %s107, %s123
      %p125 = scmp.eq.s32.totalorder %s21, 0
      %p126 = por %p124, %p125
      %p127 = scmp.le.s32.totalorder 1, %s15
      %p128 = scmp.lt.s32.totalorder %s15, 4
      %p129 = pnand %p127, %p128
      %p130 = pneg %p129
      // Predicated region
      $region9: #{tpu_custom_call.1} parent=5 // pred_check
        _
      $region10: #{tpu_custom_call.1} parent=5 // pred_check_branch
        %132 = sbr.rel (%p129) target = $region12
      $region11: #{tpu_custom_call.1} parent=5 // pred_region
        %s133 = ssub.s32 %s15, 1
      $region12: #{tpu_custom_call.1} parent=5 // pred_fallthru
        _
      %p134 = scmp.lt.s32.totalorder %s15, 3
      // Predicated region
      $region13: #{tpu_custom_call.1} parent=5 // pred_check
        %p135 = pneg %p134
      $region14: #{tpu_custom_call.1} parent=5 // pred_check_branch
        %137 = sbr.rel (%p135) target = $region16
      $region15: #{tpu_custom_call.1} parent=5 // pred_region
        // Predicated region
        $region17: #{tpu_custom_call.1} parent=15 // pred_check
          %p138 = pneg %p35
        $region18: #{tpu_custom_call.1} parent=15 // pred_check_branch
          %140 = sbr.rel (%p138) target = $region20
        $region19: #{tpu_custom_call.1} parent=15 // pred_region
          #allocation7 [shape = 'u32[6]{0}', space=smem, size = 0x18, scoped, tag = 'DMA stride descriptor']
          %s141 = sand.u32 %s25, 1
          %s142 = scalar_lea.sflag [#allocation3], %s141
          %s143 = sand.u32 %s25, 1
          %s144 = smul.addr %s143, 48
          %s145 = scalar_lea.vmem [#allocation2], %s144
          %s146 = smul.u32 2, %s15
          %s148 = ssub.s32 768, 768
          %149 = vsyncadd %s142, %s148
          %s150 = smul.addr %s146, 128
          %s151 = scalar_lea.hbm %s0, %s150
          %s153 = sshll.u32 1, 14
          %s154 = sxor.u32 4294967295, %s153
          %s156 = sld [smem:[#allocation0]]
          %s157 = sadd.s32 2, %s156
          %s159 = sshll.u32 7, 26
          %s160 = sxor.u32 4294967295, %s159
          %s161 = sand.u32 0, %s160
          %s162 = sshll.u32 %s157, 26
          %s163 = sor.u32 %s161, %s162
          %s164 = sshll.u32 %s145, 4
          %s165 = int_to_ptr.vmem [resolvable:$true] %s164
          %171 = sst [smem:[#allocation7]] 768
          %s172 = scalar_lea.smem [#allocation7], 1
          %173 = sst [smem:[%s172]] 256
          %s174 = scalar_lea.smem [#allocation7], 2
          %175 = sst [smem:[%s174]] 2
          %s176 = scalar_lea.smem [#allocation7], 3
          %177 = sst [smem:[%s176]] 128
          %s178 = scalar_lea.smem [#allocation7], 4
          %179 = sst [smem:[%s178]] 128
          %s180 = scalar_lea.smem [#allocation7], 5
          %181 = sst [smem:[%s180]] 8
          %183 = dma.general %s151, 768, %s165, %s142, [#allocation6], [#allocation7], %s163, 0
        $region20: #{tpu_custom_call.1} parent=15 // pred_fallthru
          _
        // Predicated region
        $region21: #{tpu_custom_call.1} parent=15 // pred_check
          %p184 = pneg %p61
        $region22: #{tpu_custom_call.1} parent=15 // pred_check_branch
          %186 = sbr.rel (%p184) target = $region24
        $region23: #{tpu_custom_call.1} parent=15 // pred_region
          %s187 = smul.u32 2, %s15
          %p188 = scmp.lt.s32.totalorder %s187, 5
          %s189 = scalar_select %p188, %s187, 5
          %s190 = smul.addr %s189, 8
          %s191 = scalar_lea.vmem %s1, %s190
          %s192 = smul.u32 2, %s15
        $region24: #{tpu_custom_call.1} parent=15 // pred_fallthru
          _
        // Predicated region
        $region25: #{tpu_custom_call.1} parent=15 // pred_check
          %p193 = pneg %p87
        $region26: #{tpu_custom_call.1} parent=15 // pred_check_branch
          %195 = sbr.rel (%p193) target = $region28
        $region27: #{tpu_custom_call.1} parent=15 // pred_region
          #allocation9 [shape = 'u32[6]{0}', space=smem, size = 0x18, scoped, tag = 'DMA stride descriptor']
          %s196 = sand.u32 %s77, 1
          %s197 = scalar_lea.sflag [#allocation5], %s196
          %s198 = sand.u32 %s77, 1
          %s199 = smul.addr %s198, 128
          %s200 = scalar_lea.vmem [#allocation4], %s199
          %s201 = smul.u32 2, %s15
          %s203 = ssub.s32 2048, 2048
          %204 = vsyncadd %s197, %s203
          %s205 = smul.addr %s201, 128
          %s206 = scalar_lea.hbm %s2, %s205
          %s208 = sshll.u32 1, 14
          %s209 = sxor.u32 4294967295, %s208
          %s211 = sld [smem:[#allocation0]]
          %s212 = sadd.s32 2, %s211
          %s214 = sshll.u32 7, 26
          %s215 = sxor.u32 4294967295, %s214
          %s216 = sand.u32 0, %s215
          %s217 = sshll.u32 %s212, 26
          %s218 = sor.u32 %s216, %s217
          %s219 = sshll.u32 %s200, 4
          %s220 = int_to_ptr.vmem [resolvable:$true] %s219
          %226 = sst [smem:[#allocation9]] 768
          %s227 = scalar_lea.smem [#allocation9], 1
          %228 = sst [smem:[%s227]] 256
          %s229 = scalar_lea.smem [#allocation9], 2
          %230 = sst [smem:[%s229]] 2
          %s231 = scalar_lea.smem [#allocation9], 3
          %232 = sst [smem:[%s231]] 128
          %s233 = scalar_lea.smem [#allocation9], 4
          %234 = sst [smem:[%s233]] 128
          %s235 = scalar_lea.smem [#allocation9], 5
          %236 = sst [smem:[%s235]] 8
          %238 = dma.general %s206, 2048, %s220, %s197, [#allocation8], [#allocation9], %s218, 0
        $region28: #{tpu_custom_call.1} parent=15 // pred_fallthru
          _
      $region16: #{tpu_custom_call.1} parent=5 // pred_fallthru
        _
      %p239 = scmp.le.s32.totalorder 1, %s15
      %p240 = scmp.lt.s32.totalorder %s15, 4
      %p241 = pnand %p239, %p240
      %p242 = pneg %p241
      // Predicated region
      $region29: #{tpu_custom_call.1} parent=5 // pred_check
        _
      $region30: #{tpu_custom_call.1} parent=5 // pred_check_branch
        %244 = sbr.rel (%p241) target = $region32
      $region31: #{tpu_custom_call.1} parent=5 // pred_region
        %s245 = ssub.s32 %s15, 1
        %s246 = sand.u32 %s28, 1
        %s247 = scalar_lea.sflag [#allocation3], %s246
        %s248 = sand.u32 %s28, 1
        %s249 = smul.addr %s248, 48
        %s250 = scalar_lea.vmem [#allocation2], %s249
        // Predicated region
        $region33: #{tpu_custom_call.1} parent=31 // pred_check
          %p251 = pneg %p41
        $region34: #{tpu_custom_call.1} parent=31 // pred_check_branch
          %253 = sbr.rel (%p251) target = $region36
        $region35: #{tpu_custom_call.1} parent=31 // pred_region
          %254 = dma.done %s247, 768
        $region36: #{tpu_custom_call.1} parent=31 // pred_fallthru
          _
        %s255 = sand.u32 %s80, 1
        %s256 = scalar_lea.sflag [#allocation5], %s255
        %s257 = sand.u32 %s80, 1
        %s258 = smul.addr %s257, 128
        %s259 = scalar_lea.vmem [#allocation4], %s258
        // Predicated region
        $region37: #{tpu_custom_call.1} parent=31 // pred_check
          %p260 = pneg %p93
        $region38: #{tpu_custom_call.1} parent=31 // pred_check_branch
          %262 = sbr.rel (%p260) target = $region40
        $region39: #{tpu_custom_call.1} parent=31 // pred_region
          %263 = dma.done %s256, 2048
        $region40: #{tpu_custom_call.1} parent=31 // pred_fallthru
          _
        %s264 = sand.u32 %s28, 1
        %s265 = scalar_lea.sflag [#allocation3], %s264
        %s266 = sand.u32 %s28, 1
        %s267 = smul.addr %s266, 48
        %s268 = scalar_lea.vmem [#allocation2], %s267
        %p269 = pneg %p41
        %p270 = pneg %p38
        %s271 = smul.u32 2, %s20
        %p272 = scmp.lt.s32.totalorder %s271, 5
        %s273 = scalar_select %p272, %s271, 5
        %s274 = smul.addr %s273, 8
        %s275 = scalar_lea.vmem %s1, %s274
        %p276 = pneg %p67
        %p277 = pneg %p64
        %s278 = sand.u32 %s80, 1
        %s279 = scalar_lea.sflag [#allocation5], %s278
        %s280 = sand.u32 %s80, 1
        %s281 = smul.addr %s280, 128
        %s282 = scalar_lea.vmem [#allocation4], %s281
        %p283 = pneg %p93
        %p284 = pneg %p90
        %p285 = pneg %p119
        %p286 = pneg %p116
        %s287 = smul.u32 2, %s20
        %p288 = scmp.lt.s32.totalorder %s287, 5
        %s289 = scalar_select %p288, %s287, 5
        %s290 = smul.addr %s289, 8
        %s291 = scalar_lea.vmem %s3, %s290
        %s292 = smul.u32 2, %s20
        %s293 = smul.u32 2, %s20
        %p294 = scmp.lt.s32.totalorder %s293, 5
        %s295 = scalar_select %p294, %s293, 5
        %s296 = smul.addr %s295, 8
        %s297 = scalar_lea.vmem %s1, %s296
        %s298 = smul.u32 2, %s20
        %s299 = smul.u32 2, %s20
        %s300 = smul.u32 2, %s20
        %p301 = scmp.lt.s32.totalorder %s300, 5
        %s302 = scalar_select %p301, %s300, 5
        %s303 = smul.addr %s302, 8
        %s304 = scalar_lea.vmem %s3, %s303
        %s305 = smul.u32 2, %s20
        %v306 = vld [vmem:[%s297] sm:$0xff]
        %v307 = vld [vmem:[%s297 + $0x8] sm:$0xff]
        %310 = vrot.lane.b32.xlu0 %v306, 127
        %v311 = vpop.permute.xlu0 %310
        %312 = vrot.lane.b32.xlu0 %v307, 127
        %v313 = vpop.permute.xlu0 %312
        %v316 = vmax.f32 %v306, %v311
        %v317 = vmax.f32 %v307, %v313
        %318 = vrot.lane.b32.xlu0 %v306, 126
        %v319 = vpop.permute.xlu0 %318
        %320 = vrot.lane.b32.xlu0 %v307, 126
        %v321 = vpop.permute.xlu0 %320
        %v324 = vmax.f32 %v316, %v319
        %v325 = vmax.f32 %v317, %v321
        %v326 = vsub.f32 %v306, %v324
        %v327 = vsub.f32 %v307, %v325
        %v328 = vmul.f32 %v326, 1.442695
        %v329 = vpow.pop %v328
        %v330 = vmul.f32 %v327, 1.442695
        %v331 = vpow.pop %v330
        %334 = vrot.lane.b32.xlu0 %v324, 1
        %v335 = vpop.permute.xlu0 %334
        %336 = vrot.lane.b32.xlu0 %v325, 1
        %v337 = vpop.permute.xlu0 %336
        %v340 = vsub.f32 %v306, %v335
        %v341 = vsub.f32 %v307, %v337
        %v342 = vmul.f32 %v340, 1.442695
        %v343 = vpow.pop %v342
        %v344 = vmul.f32 %v341, 1.442695
        %v345 = vpow.pop %v344
        %346 = vrot.lane.b32.xlu0 %v324, 2
        %v347 = vpop.permute.xlu0 %346
        %348 = vrot.lane.b32.xlu0 %v325, 2
        %v349 = vpop.permute.xlu0 %348
        %v352 = vsub.f32 %v306, %v347
        %v353 = vsub.f32 %v307, %v349
        %v354 = vmul.f32 %v352, 1.442695
        %v355 = vpow.pop %v354
        %v356 = vmul.f32 %v353, 1.442695
        %v357 = vpow.pop %v356
        %360 = vrot.lane.b32.xlu0 %v343, 127
        %v361 = vpop.permute.xlu0 %360
        %362 = vrot.lane.b32.xlu0 %v345, 127
        %v363 = vpop.permute.xlu0 %362
        %v366 = vadd.f32 %v329, %v361
        %v367 = vadd.f32 %v331, %v363
        %370 = vrot.lane.b32.xlu0 %v355, 126
        %v371 = vpop.permute.xlu0 %370
        %372 = vrot.lane.b32.xlu0 %v357, 126
        %v373 = vpop.permute.xlu0 %372
        %v376 = vadd.f32 %v366, %v371
        %v377 = vadd.f32 %v367, %v373
        %v378 = vrcp.pop %v376
        %v379 = vrcp.pop %v377
        %v380 = vmul.f32 %v329, %v378
        %v381 = vmul.f32 %v331, %v379
        %v382 = vld [vmem:[%s250] sm:$0xff]
        %v383 = vld [vmem:[%s250 + $0x8] sm:$0xff]
        %385 = vset.pattern.permute.xlu0 0
        %386 = vperm.xlu0 %385, %v380
        %v387 = vpop.permute.xlu0 %386
        %390 = vset.pattern.permute.xlu0 0
        %391 = vperm.xlu0 %390, %v381
        %v392 = vpop.permute.xlu0 %391
        %v394 = vmul.f32 %v387, %v382
        %v395 = vmul.f32 %v392, %v383
        %398 = vrot.lane.b32.xlu0 %v378, 1
        %v399 = vpop.permute.xlu0 %398
        %400 = vrot.lane.b32.xlu0 %v379, 1
        %v401 = vpop.permute.xlu0 %400
        %v404 = vmul.f32 %v343, %v399
        %v405 = vmul.f32 %v345, %v401
        %s406 = scalar_lea.vmem %s250, 16 [#allocation2]
        %v407 = vld [vmem:[%s406] sm:$0xff]
        %v408 = vld [vmem:[%s406 + $0x8] sm:$0xff]
        %410 = vset.pattern.permute.xlu0 1
        %411 = vperm.xlu0 %410, %v404
        %v412 = vpop.permute.xlu0 %411
        %415 = vset.pattern.permute.xlu0 1
        %416 = vperm.xlu0 %415, %v405
        %v417 = vpop.permute.xlu0 %416
        %v419 = vmul.f32 %v412, %v407
        %v420 = vmul.f32 %v417, %v408
        %v421 = vadd.f32 %v394, %v419
        %v422 = vadd.f32 %v395, %v420
        %423 = vrot.lane.b32.xlu0 %v378, 2
        %v424 = vpop.permute.xlu0 %423
        %425 = vrot.lane.b32.xlu0 %v379, 2
        %v426 = vpop.permute.xlu0 %425
        %v429 = vmul.f32 %v355, %v424
        %v430 = vmul.f32 %v357, %v426
        %s431 = scalar_lea.vmem %s250, 32 [#allocation2]
        %v432 = vld [vmem:[%s431] sm:$0xff]
        %v433 = vld [vmem:[%s431 + $0x8] sm:$0xff]
        %435 = vset.pattern.permute.xlu0 2
        %436 = vperm.xlu0 %435, %v429
        %v437 = vpop.permute.xlu0 %436
        %440 = vset.pattern.permute.xlu0 2
        %441 = vperm.xlu0 %440, %v430
        %v442 = vpop.permute.xlu0 %441
        %v444 = vmul.f32 %v437, %v432
        %v445 = vmul.f32 %v442, %v433
        %v446 = vadd.f32 %v421, %v444
        %v447 = vadd.f32 %v422, %v445
        %v448 = vld [vmem:[%s259] sm:$0xff]
        %v449 = vld [vmem:[%s259 + $0x8] sm:$0xff]
        %v450 = vmul.f32 %v446, %v448
        %v451 = vmul.f32 %v447, %v449
        %452 = vadd.xlane.f32.xlu0 %v450
        %v453 = vpop.xlane.xlu0 %452
        %454 = vadd.xlane.f32.xlu0 %v451
        %v455 = vpop.xlane.xlu0 %454
        %s456 = scalar_lea.vmem %s259, 16 [#allocation4]
        %v457 = vld [vmem:[%s456] sm:$0xff]
        %v458 = vld [vmem:[%s456 + $0x8] sm:$0xff]
        %v459 = vmul.f32 %v446, %v457
        %v460 = vmul.f32 %v447, %v458
        %461 = vadd.xlane.f32.xlu0 %v459
        %v462 = vpop.xlane.xlu0 %461
        %463 = vadd.xlane.f32.xlu0 %v460
        %v464 = vpop.xlane.xlu0 %463
        %s465 = scalar_lea.vmem %s259, 32 [#allocation4]
        %v466 = vld [vmem:[%s465] sm:$0xff]
        %v467 = vld [vmem:[%s465 + $0x8] sm:$0xff]
        %v468 = vmul.f32 %v446, %v466
        %v469 = vmul.f32 %v447, %v467
        %470 = vadd.xlane.f32.xlu0 %v468
        %v471 = vpop.xlane.xlu0 %470
        %472 = vadd.xlane.f32.xlu0 %v469
        %v473 = vpop.xlane.xlu0 %472
        %s474 = scalar_lea.vmem %s259, 48 [#allocation4]
        %v475 = vld [vmem:[%s474] sm:$0xff]
        %v476 = vld [vmem:[%s474 + $0x8] sm:$0xff]
        %v477 = vmul.f32 %v446, %v475
        %v478 = vmul.f32 %v447, %v476
        %479 = vadd.xlane.f32.xlu0 %v477
        %v480 = vpop.xlane.xlu0 %479
        %481 = vadd.xlane.f32.xlu0 %v478
        %v482 = vpop.xlane.xlu0 %481
        %s483 = scalar_lea.vmem %s259, 64 [#allocation4]
        %v484 = vld [vmem:[%s483] sm:$0xff]
        %v485 = vld [vmem:[%s483 + $0x8] sm:$0xff]
        %v486 = vmul.f32 %v446, %v484
        %v487 = vmul.f32 %v447, %v485
        %488 = vadd.xlane.f32.xlu0 %v486
        %v489 = vpop.xlane.xlu0 %488
        %490 = vadd.xlane.f32.xlu0 %v487
        %v491 = vpop.xlane.xlu0 %490
        %s492 = scalar_lea.vmem %s259, 80 [#allocation4]
        %v493 = vld [vmem:[%s492] sm:$0xff]
        %v494 = vld [vmem:[%s492 + $0x8] sm:$0xff]
        %v495 = vmul.f32 %v446, %v493
        %v496 = vmul.f32 %v447, %v494
        %497 = vadd.xlane.f32.xlu0 %v495
        %v498 = vpop.xlane.xlu0 %497
        %499 = vadd.xlane.f32.xlu0 %v496
        %v500 = vpop.xlane.xlu0 %499
        %s501 = scalar_lea.vmem %s259, 96 [#allocation4]
        %v502 = vld [vmem:[%s501] sm:$0xff]
        %v503 = vld [vmem:[%s501 + $0x8] sm:$0xff]
        %v504 = vmul.f32 %v446, %v502
        %v505 = vmul.f32 %v447, %v503
        %506 = vadd.xlane.f32.xlu0 %v504
        %v507 = vpop.xlane.xlu0 %506
        %508 = vadd.xlane.f32.xlu0 %v505
        %v509 = vpop.xlane.xlu0 %508
        %s510 = scalar_lea.vmem %s259, 112 [#allocation4]
        %v511 = vld [vmem:[%s510] sm:$0xff]
        %v512 = vld [vmem:[%s510 + $0x8] sm:$0xff]
        %v513 = vmul.f32 %v446, %v511
        %v514 = vmul.f32 %v447, %v512
        %515 = vadd.xlane.f32.xlu0 %v513
        %v516 = vpop.xlane.xlu0 %515
        %517 = vadd.xlane.f32.xlu0 %v514
        %v518 = vpop.xlane.xlu0 %517
        %vm519 = vcmask 7168
        %v520 = vsel %vm519, %v453, %v462
        %v521 = vsel %vm519, %v455, %v464
        %vm522 = vcmask 15360
        %v523 = vsel %vm522, %v520, %v471
        %v524 = vsel %vm522, %v521, %v473
        %vm525 = vcmask 23552
        %v526 = vsel %vm525, %v523, %v480
        %v527 = vsel %vm525, %v524, %v482
        %vm528 = vcmask 31744
        %v529 = vsel %vm528, %v526, %v489
        %v530 = vsel %vm528, %v527, %v491
        %vm531 = vcmask 39936
        %v532 = vsel %vm531, %v529, %v498
        %v533 = vsel %vm531, %v530, %v500
        %vm534 = vcmask 48128
        %v535 = vsel %vm534, %v532, %v507
        %v536 = vsel %vm534, %v533, %v509
        %vm537 = vcmask 56320
        %v538 = vsel %vm537, %v535, %v516
        %v539 = vsel %vm537, %v536, %v518
        %v540 = vxor.u32 %v538, 2147483648
        %v541 = vxor.u32 %v539, 2147483648
        %v542 = vmul.f32 %v540, 1.442695
        %v543 = vpow.pop %v542
        %v544 = vmul.f32 %v541, 1.442695
        %v545 = vpow.pop %v544
        %v546 = vadd.f32 %v543, 1.0
        %v547 = vadd.f32 %v545, 1.0
        %v548 = vrcp.pop %v546
        %v549 = vmul.f32 1.0, %v548
        %v550 = vrcp.pop %v547
        %v551 = vmul.f32 1.0, %v550
        %vm552 = vcmask 64512
        %553 = vst.msk [vmem:[%s304] sm:$0xff] %vm552, %v549
        %554 = vst.msk [vmem:[%s304 + $0x8] sm:$0xff] %vm552, %v551
        %s555 = smul.u32 2, %s20
        %p556 = scmp.lt.s32.totalorder %s555, 5
        %s557 = scalar_select %p556, %s555, 5
        %s558 = smul.addr %s557, 8
        %s559 = scalar_lea.vmem %s3, %s558
        // Predicated region
        $region41: #{tpu_custom_call.1} parent=31 // pred_check
          %p560 = pneg %p116
        $region42: #{tpu_custom_call.1} parent=31 // pred_check_branch
          %562 = sbr.rel (%p560) target = $region44
        $region43: #{tpu_custom_call.1} parent=31 // pred_region
          %s563 = smul.u32 2, %s20
        $region44: #{tpu_custom_call.1} parent=31 // pred_fallthru
          _
      $region32: #{tpu_custom_call.1} parent=5 // pred_fallthru
        _
      %p564 = scmp.le.s32.totalorder 2, %s15
      // Predicated region
      $region45: #{tpu_custom_call.1} parent=5 // pred_check
        %p565 = pneg %p564
      $region46: #{tpu_custom_call.1} parent=5 // pred_check_branch
        %567 = sbr.rel (%p565) target = $region48
      $region47: #{tpu_custom_call.1} parent=5 // pred_region
        %s568 = ssub.s32 %s15, 2
        // Predicated region
        $region49: #{tpu_custom_call.1} parent=47 // pred_check
          %p569 = pneg %p122
        $region50: #{tpu_custom_call.1} parent=47 // pred_check_branch
          %571 = sbr.rel (%p569) target = $region52
        $region51: #{tpu_custom_call.1} parent=47 // pred_region
          %s572 = smul.u32 2, %s21
          %p573 = scmp.lt.s32.totalorder %s572, 5
          %s574 = scalar_select %p573, %s572, 5
          %s575 = smul.addr %s574, 8
          %s576 = scalar_lea.vmem %s3, %s575
        $region52: #{tpu_custom_call.1} parent=47 // pred_fallthru
          _
      $region48: #{tpu_custom_call.1} parent=5 // pred_fallthru
        _
    $region6: #{tpu_custom_call.1} parent=1 // loop_footer
      %s19 = sadd.s32 1, %s15
    $region7: #{tpu_custom_call.1} parent=1 // loop_footer_branch
      %14 = sbr.rel target = $region3
    $region8: #{tpu_custom_call.1} parent=1 // loop_exit
      _
    %577 = vsyncpa [#allocation3], 1
    %s578 = scalar_lea.sflag [#allocation3], 1
    %579 = vsyncpa %s578, 1
    %580 = vsyncpa [#allocation5], 1
    %s581 = scalar_lea.sflag [#allocation5], 1
    %582 = vsyncpa %s581, 1

</llo_original>
